<compile_context>
chip_gen: v6e
topology: v6e:2x2x1
jax: 0.10.0
libtpu: 0.0.40
codegen_flags: <defaults>
</compile_context>

<pallas_src>
import functools

import jax
import jax.numpy as jnp
from jax.experimental import pallas as pl
from jax.experimental.pallas import tpu as pltpu

INPUT_DIM = 33
HIDDEN_DIM = 128
OUTPUT_DIM = 5

# Default batch tile (rows per grid step). Large enough to amortize per-step
# pipeline overhead; small enough for every chip's default scoped VMEM.
DEFAULT_TILE_B = 2048


def _round_up(n, m):
    return ((n + m - 1) // m) * m


def _mlp_softmax_kernel(x_ref, w1_ref, b1_ref, w2_ref, b2_ref, w3_ref, b3_ref, o_ref):
    # Layer 1: Linear(33 -> 128) + ReLU. bf16 MXU operands, f32 accumulation.
    # astype is a no-op when the producer already supplies bf16 x.
    x = x_ref[...].astype(jnp.bfloat16)
    h1 = jnp.dot(x, w1_ref[...], preferred_element_type=jnp.float32) + b1_ref[...]
    h1 = jnp.maximum(h1, 0.0)

    # Layer 2: Linear(128 -> 128) + ReLU.
    h2 = jnp.dot(h1.astype(jnp.bfloat16), w2_ref[...],
                 preferred_element_type=jnp.float32) + b2_ref[...]
    h2 = jnp.maximum(h2, 0.0)

    # Layer 3: Linear(128 -> 5).
    logits = jnp.dot(h2.astype(jnp.bfloat16), w3_ref[...],
                     preferred_element_type=jnp.float32) + b3_ref[...]

    # Numerically stable softmax over the last dim (per-row only: safe with a
    # masked partial final block, since padded rows never feed valid rows).
    m = jnp.max(logits, axis=-1, keepdims=True)
    e = jnp.exp(logits - m)
    s = jnp.sum(e, axis=-1, keepdims=True)
    o_ref[...] = (e / s).astype(o_ref.dtype)


def prepare_params(params):
    """One-time (outside-jit) conversion to kernel-ready dtypes/layouts:
    bf16 weights (MXU operands), f32 biases shaped (1, out)."""
    def w(a):
        return jnp.asarray(a, jnp.bfloat16)

    def b(a):
        return jnp.asarray(a, jnp.float32).reshape(1, -1)

    return {"w1": w(params["w1"]), "b1": b(params["b1"]),
            "w2": w(params["w2"]), "b2": b(params["b2"]),
            "w3": w(params["w3"]), "b3": b(params["b3"])}


@functools.partial(jax.jit, static_argnames=("tile_b",))
def feature_classifier_forward(x, params, tile_b=DEFAULT_TILE_B):
    """x: (batch, 33), f32 or bf16 (bf16 halves the dominant input DMA).
    params: output of prepare_params (bf16 weights, f32 (1, out) biases)."""
    w1, b1 = params["w1"], params["b1"]
    w2, b2 = params["w2"], params["b2"]
    w3, b3 = params["w3"], params["b3"]

    batch = x.shape[0]
    # v7x has 2 TensorCores; the "parallel" grid axis is how work shards across
    # them. If the whole batch fits in one tile, split it so the grid has >= 2
    # steps (sublane-aligned). Harmless on single-TC v5e/v6e.
    if batch <= 2 * tile_b:
        tb = max(8, min(tile_b, _round_up(pl.cdiv(batch, 2), 8)))
    else:
        tb = tile_b
    # No wrapper-side padding: partial final block is masked by Pallas.
    grid = (pl.cdiv(batch, tb),)

    # Weights/biases: constant index_map -> fetched once, VMEM-resident.
    def resident(shape):
        return pl.BlockSpec(shape, lambda i: (0, 0))

    flops = 2 * batch * (INPUT_DIM * HIDDEN_DIM
                         + HIDDEN_DIM * HIDDEN_DIM
                         + HIDDEN_DIM * OUTPUT_DIM)
    bytes_accessed = (
        batch * INPUT_DIM * x.dtype.itemsize          # x
        + batch * OUTPUT_DIM * 4                      # out (f32)
        + sum(int(p.size) * p.dtype.itemsize for p in (w1, w2, w3, b1, b2, b3))
    )

    compiler_kwargs = dict(dimension_semantics=("parallel",))
    if tb > 2048:
        # v5e's default scoped VMEM is 16 MiB; larger tiles need more headroom.
        # 48 MiB still fits within v7x's 64 MiB physical VMEM.
        compiler_kwargs["vmem_limit_bytes"] = 48 * 1024 * 1024

    out = pl.pallas_call(
        _mlp_softmax_kernel,
        out_shape=jax.ShapeDtypeStruct((batch, OUTPUT_DIM), jnp.float32),
        grid=grid,
        in_specs=[
            pl.BlockSpec((tb, INPUT_DIM), lambda i: (i, 0)),
            resident(w1.shape), resident(b1.shape),
            resident(w2.shape), resident(b2.shape),
            resident(w3.shape), resident(b3.shape),
        ],
        out_specs=pl.BlockSpec((tb, OUTPUT_DIM), lambda i: (i, 0)),
        compiler_params=pltpu.CompilerParams(**compiler_kwargs),
        cost_estimate=pl.CostEstimate(
            flops=flops,
            transcendentals=batch * OUTPUT_DIM,   # exp
            bytes_accessed=bytes_accessed,
        ),
    )(x, w1, b1, w2, b2, w3, b3)

    return out


def init_params(key):
    """Parameter shapes match the PyTorch module; weights stored transposed
    (in, out), biases as (1, out). f32, PyTorch-style init."""
    k1, k2, k3, k4, k5, k6 = jax.random.split(key, 6)
    s1 = 1.0 / jnp.sqrt(INPUT_DIM)
    s2 = 1.0 / jnp.sqrt(HIDDEN_DIM)
    return {
        "w1": jax.random.uniform(k1, (INPUT_DIM, HIDDEN_DIM), jnp.float32, -s1, s1),
        "b1": jax.random.uniform(k2, (1, HIDDEN_DIM), jnp.float32, -s1, s1),
        "w2": jax.random.uniform(k3, (HIDDEN_DIM, HIDDEN_DIM), jnp.float32, -s2, s2),
        "b2": jax.random.uniform(k4, (1, HIDDEN_DIM), jnp.float32, -s2, s2),
        "w3": jax.random.uniform(k5, (HIDDEN_DIM, OUTPUT_DIM), jnp.float32, -s2, s2),
        "b3": jax.random.uniform(k6, (1, OUTPUT_DIM), jnp.float32, -s2, s2),
    }


def _reference_forward(x, params):
    h1 = jnp.maximum(x @ params["w1"] + params["b1"], 0.0)
    h2 = jnp.maximum(h1 @ params["w2"] + params["b2"], 0.0)
    logits = h2 @ params["w3"] + params["b3"]
    return jax.nn.softmax(logits, axis=-1)


if __name__ == "__main__":
    key = jax.random.PRNGKey(0)
    kp, kx, kx2 = jax.random.split(key, 3)

    params_f32 = init_params(kp)
    kparams = prepare_params(params_f32)   # one-time bf16 conversion, outside jit

    # Small batch: single (partial) tile.
    batch = 8
    x = jax.random.normal(kx, (batch, INPUT_DIM), dtype=jnp.float32)
    out = jax.block_until_ready(feature_classifier_forward(x, kparams))
    ref = _reference_forward(x, params_f32)
    assert out.shape == (batch, OUTPUT_DIM)
    assert jnp.allclose(out, ref, atol=2e-2, rtol=2e-2)          # bf16 matmul tol
    assert jnp.allclose(jnp.sum(out, axis=-1), 1.0, atol=1e-5)   # exact softmax norm

    # Non-multiple batch: multi-step grid + masked partial final block, no pad/slice.
    batch2 = 1029
    x2 = jax.random.normal(kx2, (batch2, INPUT_DIM), dtype=jnp.float32)
    out2 = jax.block_until_ready(feature_classifier_forward(x2, kparams))
    ref2 = _reference_forward(x2, params_f32)
    assert out2.shape == (batch2, OUTPUT_DIM)
    assert jnp.allclose(out2, ref2, atol=2e-2, rtol=2e-2)
    assert jnp.allclose(jnp.sum(out2, axis=-1), 1.0, atol=1e-5)

    # bf16 ingestion path: producer emits bf16 x (halves the dominant x DMA).
    out3 = jax.block_until_ready(
        feature_classifier_forward(x2.astype(jnp.bfloat16), kparams))
    assert out3.shape == (batch2, OUTPUT_DIM)
    assert jnp.allclose(jnp.sum(out3, axis=-1), 1.0, atol=1e-5)
    assert jnp.allclose(out3, ref2, atol=6e-2, rtol=6e-2)        # bf16-input tol

    print("KERNEL_OK")
</pallas_src>

<mosaic_0001>
module attributes {stable_mosaic.version = 11 : i64} {
  func.func @_mlp_softmax_kernel(%arg0: i32, %arg1: memref<8x33xf32, #tpu.memory_space<vmem>>, %arg2: memref<33x128xbf16, #tpu.memory_space<vmem>>, %arg3: memref<1x128xf32, #tpu.memory_space<vmem>>, %arg4: memref<128x128xbf16, #tpu.memory_space<vmem>>, %arg5: memref<1x128xf32, #tpu.memory_space<vmem>>, %arg6: memref<128x5xbf16, #tpu.memory_space<vmem>>, %arg7: memref<1x5xf32, #tpu.memory_space<vmem>>, %arg8: memref<8x5xf32, #tpu.memory_space<vmem>>) attributes {dimension_semantics = [#tpu.dimension_semantics<parallel>], iteration_bounds = array<i64: 1>, scalar_prefetch = 0 : i64, scratch_operands = 0 : i64, tpu.core_type = #tpu.core_type<tc>, window_params = [{transform_indices = @transform_0, window_bounds = array<i64: 8, 33>}, {pipeline_mode = #tpu.pipeline_mode<synchronous>, transform_indices = @transform_1, window_bounds = array<i64: 33, 128>}, {pipeline_mode = #tpu.pipeline_mode<synchronous>, transform_indices = @transform_2, window_bounds = array<i64: 1, 128>}, {pipeline_mode = #tpu.pipeline_mode<synchronous>, transform_indices = @transform_3, window_bounds = array<i64: 128, 128>}, {pipeline_mode = #tpu.pipeline_mode<synchronous>, transform_indices = @transform_4, window_bounds = array<i64: 1, 128>}, {pipeline_mode = #tpu.pipeline_mode<synchronous>, transform_indices = @transform_5, window_bounds = array<i64: 128, 5>}, {pipeline_mode = #tpu.pipeline_mode<synchronous>, transform_indices = @transform_6, window_bounds = array<i64: 1, 5>}, {transform_indices = @transform_7, window_bounds = array<i64: 8, 5>}]} {
    %c0 = arith.constant 0 : index
    %c0_0 = arith.constant 0 : index
    %0 = vector.load %arg1[%c0, %c0_0] : memref<8x33xf32, #tpu.memory_space<vmem>>, vector<8x33xf32>
    %1 = arith.truncf %0 : vector<8x33xf32> to vector<8x33xbf16>
    %c0_1 = arith.constant 0 : index
    %c0_2 = arith.constant 0 : index
    %2 = vector.load %arg2[%c0_1, %c0_2] : memref<33x128xbf16, #tpu.memory_space<vmem>>, vector<33x128xbf16>
    %cst = arith.constant dense<0.000000e+00> : vector<8x128xf32>
    %3 = tpu.matmul %1, %2, %cst {dimension_numbers = #tpu.dot_dimension_numbers<[1], [0], [0], [1], [0, 0, 1, 1], [], []>} : vector<8x33xbf16>, vector<33x128xbf16>, vector<8x128xf32> -> vector<8x128xf32>
    %c0_3 = arith.constant 0 : index
    %c0_4 = arith.constant 0 : index
    %4 = vector.load %arg3[%c0_3, %c0_4] : memref<1x128xf32, #tpu.memory_space<vmem>>, vector<1x128xf32>
    %5 = vector.broadcast %4 : vector<1x128xf32> to vector<8x128xf32>
    %6 = arith.addf %3, %5 : vector<8x128xf32>
    %cst_5 = arith.constant 0.000000e+00 : f32
    %7 = vector.broadcast %cst_5 : f32 to vector<8x128xf32>
    %8 = arith.maximumf %6, %7 : vector<8x128xf32>
    %9 = arith.truncf %8 : vector<8x128xf32> to vector<8x128xbf16>
    %c0_6 = arith.constant 0 : index
    %c0_7 = arith.constant 0 : index
    %10 = vector.load %arg4[%c0_6, %c0_7] : memref<128x128xbf16, #tpu.memory_space<vmem>>, vector<128x128xbf16>
    %cst_8 = arith.constant dense<0.000000e+00> : vector<8x128xf32>
    %11 = tpu.matmul %9, %10, %cst_8 {dimension_numbers = #tpu.dot_dimension_numbers<[1], [0], [0], [1], [0, 0, 1, 1], [], []>} : vector<8x128xbf16>, vector<128x128xbf16>, vector<8x128xf32> -> vector<8x128xf32>
    %c0_9 = arith.constant 0 : index
    %c0_10 = arith.constant 0 : index
    %12 = vector.load %arg5[%c0_9, %c0_10] : memref<1x128xf32, #tpu.memory_space<vmem>>, vector<1x128xf32>
    %13 = vector.broadcast %12 : vector<1x128xf32> to vector<8x128xf32>
    %14 = arith.addf %11, %13 : vector<8x128xf32>
    %cst_11 = arith.constant 0.000000e+00 : f32
    %15 = vector.broadcast %cst_11 : f32 to vector<8x128xf32>
    %16 = arith.maximumf %14, %15 : vector<8x128xf32>
    %17 = arith.truncf %16 : vector<8x128xf32> to vector<8x128xbf16>
    %c0_12 = arith.constant 0 : index
    %c0_13 = arith.constant 0 : index
    %18 = vector.load %arg6[%c0_12, %c0_13] : memref<128x5xbf16, #tpu.memory_space<vmem>>, vector<128x5xbf16>
    %cst_14 = arith.constant dense<0.000000e+00> : vector<8x5xf32>
    %19 = tpu.matmul %17, %18, %cst_14 {dimension_numbers = #tpu.dot_dimension_numbers<[1], [0], [0], [1], [0, 0, 1, 1], [], []>} : vector<8x128xbf16>, vector<128x5xbf16>, vector<8x5xf32> -> vector<8x5xf32>
    %c0_15 = arith.constant 0 : index
    %c0_16 = arith.constant 0 : index
    %20 = vector.load %arg7[%c0_15, %c0_16] : memref<1x5xf32, #tpu.memory_space<vmem>>, vector<1x5xf32>
    %21 = vector.broadcast %20 : vector<1x5xf32> to vector<8x5xf32>
    %22 = arith.addf %19, %21 : vector<8x5xf32>
    %cst_17 = arith.constant dense<0xFF800000> : vector<8xf32>
    %23 = vector.multi_reduction <maximumf>, %22, %cst_17 [1] : vector<8x5xf32> to vector<8xf32>
    %24 = vector.shape_cast %23 : vector<8xf32> to vector<8x1xf32>
    %25 = vector.broadcast %24 : vector<8x1xf32> to vector<8x5xf32>
    %26 = arith.subf %22, %25 : vector<8x5xf32>
    %27 = math.exp %26 : vector<8x5xf32>
    %cst_18 = arith.constant dense<0.000000e+00> : vector<8xf32>
    %28 = vector.multi_reduction <add>, %27, %cst_18 [1] : vector<8x5xf32> to vector<8xf32>
    %29 = vector.shape_cast %28 : vector<8xf32> to vector<8x1xf32>
    %30 = vector.broadcast %29 : vector<8x1xf32> to vector<8x5xf32>
    %31 = arith.divf %27, %30 : vector<8x5xf32>
    %c0_19 = arith.constant 0 : index
    %c0_20 = arith.constant 0 : index
    %32 = vector.load %arg8[%c0_19, %c0_20] : memref<8x5xf32, #tpu.memory_space<vmem>>, vector<8x5xf32>
    tpu.vector_store %arg8[%c0_19, %c0_20], %31 {strides = array<i32>} : memref<8x5xf32, #tpu.memory_space<vmem>>, vector<8x5xf32>,
    return
  }
  func.func @transform_0(%arg0: i32) -> (i32, i32) {
    %c0_i32 = arith.constant 0 : i32
    %c0_i32_0 = arith.constant 0 : i32
    return %arg0, %c0_i32 : i32, i32
  }
  func.func @transform_1(%arg0: i32) -> (i32, i32) {
    %c0_i32 = arith.constant 0 : i32
    %c0_i32_0 = arith.constant 0 : i32
    %c0_i32_1 = arith.constant 0 : i32
    return %c0_i32, %c0_i32_0 : i32, i32
  }
  func.func @transform_2(%arg0: i32) -> (i32, i32) {
    %c0_i32 = arith.constant 0 : i32
    %c0_i32_0 = arith.constant 0 : i32
    %c0_i32_1 = arith.constant 0 : i32
    return %c0_i32, %c0_i32_0 : i32, i32
  }
  func.func @transform_3(%arg0: i32) -> (i32, i32) {
    %c0_i32 = arith.constant 0 : i32
    %c0_i32_0 = arith.constant 0 : i32
    %c0_i32_1 = arith.constant 0 : i32
    return %c0_i32, %c0_i32_0 : i32, i32
  }
  func.func @transform_4(%arg0: i32) -> (i32, i32) {
    %c0_i32 = arith.constant 0 : i32
    %c0_i32_0 = arith.constant 0 : i32
    %c0_i32_1 = arith.constant 0 : i32
    return %c0_i32, %c0_i32_0 : i32, i32
  }
  func.func @transform_5(%arg0: i32) -> (i32, i32) {
    %c0_i32 = arith.constant 0 : i32
    %c0_i32_0 = arith.constant 0 : i32
    %c0_i32_1 = arith.constant 0 : i32
    return %c0_i32, %c0_i32_0 : i32, i32
  }
  func.func @transform_6(%arg0: i32) -> (i32, i32) {
    %c0_i32 = arith.constant 0 : i32
    %c0_i32_0 = arith.constant 0 : i32
    %c0_i32_1 = arith.constant 0 : i32
    return %c0_i32, %c0_i32_0 : i32, i32
  }
  func.func @transform_7(%arg0: i32) -> (i32, i32) {
    %c0_i32 = arith.constant 0 : i32
    %c0_i32_0 = arith.constant 0 : i32
    return %arg0, %c0_i32 : i32, i32
  }
}

</mosaic_0001>

<llo_original>
// kernel: feature_classifier_forward.1
$region0: #{feature_classifier_forward.1}
  #allocation0 [shape = 'u32[]', space=smem, size = 0x4, offset = 0x4, fixed_abs, tag = 'smem constant byte address 0x4 - core index']
  #allocation1 [shape = 'u32[144,128]{1,0:T(1,128)}', space=vmem, size = 0x12000, scoped, tag = 'internal scratch']
  %s0 = inlined_call_operand.vmem [shape: f32[8,33], index: 0, kind: input, shape index: {}]
  %s1 = inlined_call_operand.hbm [shape: bf16[33,128], index: 1, kind: input, shape index: {}]
  %s2 = inlined_call_operand.vmem [shape: f32[1,128], index: 2, kind: input, shape index: {}]
  %s3 = inlined_call_operand.vmem [shape: bf16[128,128], index: 3, kind: input, shape index: {}]
  %s4 = inlined_call_operand.vmem [shape: f32[1,128], index: 4, kind: input, shape index: {}]
  %s5 = inlined_call_operand.vmem [shape: bf16[128,5], index: 5, kind: input, shape index: {}]
  %s6 = inlined_call_operand.hbm [shape: f32[1,5], index: 6, kind: input, shape index: {}]
  %s7 = inlined_call_operand.hbm [shape: f32[8,5], index: 7, kind: output, shape index: {}]
  %s8 = sld [smem:[#allocation0]]
  $region46: #{feature_classifier_forward.1} parent=0
    _
  %s10 = ssub.s32 1, %s8
  %s11 = scalar_select 0, %s10, %s8
  $region1: #{feature_classifier_forward.1} parent=0
    #allocation2 [shape = 'u8[10240]{0}', space=vmem, size = 0x2800, scoped, tag = 'input window, operand 1, single buffered']
    #allocation3 [shape = 's32[1]{0}', space=sflag, size = 0x4, scoped, tag = 'scoped memory for feature_classifier_forward.1']
    #allocation4 [shape = 's32[1]{0}', space=sflag, size = 0x4, scoped, tag = 'scoped memory for feature_classifier_forward.1']
    #allocation5 [shape = 'u8[512]{0}', space=vmem, size = 0x400, scoped, tag = 'input window, operand 6, single buffered']
    #allocation6 [shape = 's32[1]{0}', space=sflag, size = 0x4, scoped, tag = 'scoped memory for feature_classifier_forward.1']
    #allocation7 [shape = 'u8[4096]{0}', space=vmem, size = 0x1000, scoped, tag = 'output window, operand 0, single buffered']
    %12 = vsyncpa [#allocation3], 0
    %13 = vsyncpa [#allocation6], 0
    %14 = vsyncpa [#allocation4], 0
    // Predicated region
    $region2: #{feature_classifier_forward.1} parent=1 // pred_check
      _
    $region3: #{feature_classifier_forward.1} parent=1 // pred_check_branch
      %16 = sbr.rel (0) target = $region5
    $region4: #{feature_classifier_forward.1} parent=1 // pred_region
      _
    $region5: #{feature_classifier_forward.1} parent=1 // pred_fallthru
      _
    // Predicated region
    $region6: #{feature_classifier_forward.1} parent=1 // pred_check
      _
    $region7: #{feature_classifier_forward.1} parent=1 // pred_check_branch
      %18 = sbr.rel (0) target = $region9
    $region8: #{feature_classifier_forward.1} parent=1 // pred_region
      %s20 = ssub.s32 320, 320
      %21 = vsyncadd [#allocation3], %s20
      %s22 = sshll.u32 [#allocation2], 4
      %s23 = int_to_ptr.vmem [resolvable:$true] %s22
      %28 = dma.hbm_to_vmem [thread:$0]  %s1, 320, %s23, [#allocation3], 64, 64, 4
    $region9: #{feature_classifier_forward.1} parent=1 // pred_fallthru
      _
    // Predicated region
    $region10: #{feature_classifier_forward.1} parent=1 // pred_check
      _
    $region11: #{feature_classifier_forward.1} parent=1 // pred_check_branch
      %30 = sbr.rel (0) target = $region13
    $region12: #{feature_classifier_forward.1} parent=1 // pred_region
      _
    $region13: #{feature_classifier_forward.1} parent=1 // pred_fallthru
      _
    // Predicated region
    $region14: #{feature_classifier_forward.1} parent=1 // pred_check
      _
    $region15: #{feature_classifier_forward.1} parent=1 // pred_check_branch
      %32 = sbr.rel (0) target = $region17
    $region16: #{feature_classifier_forward.1} parent=1 // pred_region
      _
    $region17: #{feature_classifier_forward.1} parent=1 // pred_fallthru
      _
    // Predicated region
    $region18: #{feature_classifier_forward.1} parent=1 // pred_check
      _
    $region19: #{feature_classifier_forward.1} parent=1 // pred_check_branch
      %34 = sbr.rel (0) target = $region21
    $region20: #{feature_classifier_forward.1} parent=1 // pred_region
      _
    $region21: #{feature_classifier_forward.1} parent=1 // pred_fallthru
      _
    // Predicated region
    $region22: #{feature_classifier_forward.1} parent=1 // pred_check
      _
    $region23: #{feature_classifier_forward.1} parent=1 // pred_check_branch
      %36 = sbr.rel (0) target = $region25
    $region24: #{feature_classifier_forward.1} parent=1 // pred_region
      _
    $region25: #{feature_classifier_forward.1} parent=1 // pred_fallthru
      _
    // Predicated region
    $region26: #{feature_classifier_forward.1} parent=1 // pred_check
      _
    $region27: #{feature_classifier_forward.1} parent=1 // pred_check_branch
      %38 = sbr.rel (0) target = $region29
    $region28: #{feature_classifier_forward.1} parent=1 // pred_region
      %s40 = ssub.s32 16, 16
      %41 = vsyncadd [#allocation6], %s40
      %s43 = sshll.u32 [#allocation5], 4
      %s44 = int_to_ptr.vmem [resolvable:$true] %s43
      %46 = dma.hbm_to_vmem [thread:$0]  %s6, 16, %s44, [#allocation6]
    $region29: #{feature_classifier_forward.1} parent=1 // pred_fallthru
      _
    // Predicated region
    $region30: #{feature_classifier_forward.1} parent=1 // pred_check
      _
    $region31: #{feature_classifier_forward.1} parent=1 // pred_check_branch
      %48 = sbr.rel (0) target = $region33
    $region32: #{feature_classifier_forward.1} parent=1 // pred_region
      %49 = dma.done [#allocation3], 320
    $region33: #{feature_classifier_forward.1} parent=1 // pred_fallthru
      _
    // Predicated region
    $region34: #{feature_classifier_forward.1} parent=1 // pred_check
      _
    $region35: #{feature_classifier_forward.1} parent=1 // pred_check_branch
      %51 = sbr.rel (0) target = $region37
    $region36: #{feature_classifier_forward.1} parent=1 // pred_region
      %52 = dma.done [#allocation6], 16
    $region37: #{feature_classifier_forward.1} parent=1 // pred_fallthru
      _
    %v54 = vld [vmem:[%s0] sm:$0xff]
    %v55 = vpack.c.bf16 %v54, %v54
    %v56 = vld [vmem:[#allocation2] sm:$0xf]
    %v57 = vld [vmem:[#allocation2 + $0x4] sm:$0xf]
    %v58 = vld [vmem:[#allocation2 + $0x8] sm:$0xf]
    %v59 = vld [vmem:[#allocation2 + $0xc] sm:$0xf]
    %v60 = vld [vmem:[#allocation2 + $0x10] sm:$0x1]
    %v61 = vld [vmem:[%s2] sm:$0x1]
    %v63 = vlaneseq
    %v64 = vshrl.u32 %v63, 7
    %v65 = vsub.s32 0, %v64
    %v66 = vrot.slane %v61, %v65
    %v73 = vunpack.c.l.b16 %v56
    %v74 = vunpack.c.l.b16 %v57
    %v75 = vunpack.c.l.b16 %v58
    %v76 = vunpack.c.l.b16 %v59
    %v77 = vunpack.c.l.b16 %v60
    %v78 = vpack.c.b16 %v74, %v73
    %v79 = vpack.c.b16 %v76, %v75
    %v80 = vpack.c.b16 %v77, %v77
    %vm83 = vcmask 269312
    %v85 = vsel %vm83, %v55, 0
    %vm87 = vcmask 1040384
    %v88 = vsel 0, 4294967295, 65535
    %v89 = vsel %vm87, %v88, 0
    %v91 = vand.u32 %v80, %v89
    %93 = vmatprep.subr.bf16.mxu0 0
    %94 = vmatpush1.bf16.msra.mxu0 0
    %95 = vmatprep.subr.bf16.mxu0 0
    %96 = vmatpush1.bf16.msra.mxu0 0
    %97 = vmatprep.subr.bf16.mxu0 0
    %98 = vmatpush1.bf16.msra.mxu0 0
    %99 = vmatprep.subr.bf16.mxu0 0
    %100 = vmatpush1.bf16.msra.mxu0 0
    %101 = vmatprep.subr.bf16.mxu0 0
    %102 = vmatpush1.bf16.msra.mxu0 0
    %103 = vmatprep.subr.bf16.mxu0 0
    %104 = vmatpush1.bf16.msra.mxu0 %v91
    %105 = vmatprep.subr.bf16.mxu0 0
    %106 = vmatpush1.bf16.msra.mxu0 %v79
    %107 = vmatprep.subr.bf16.mxu0 0
    %108 = vmatpush1.bf16.msra.mxu0 %v78
    %109 = vmatprep.subr.bf16.mxu0 0
    %110 = vmatpush2.bf16.msra.mxu0 0
    %111 = vmatprep.subr.bf16.mxu0 0
    %112 = vmatpush2.bf16.msra.mxu0 0
    %113 = vmatprep.subr.bf16.mxu0 0
    %114 = vmatpush2.bf16.msra.mxu0 0
    %115 = vmatprep.subr.bf16.mxu0 0
    %116 = vmatpush2.bf16.msra.mxu0 0
    %117 = vmatprep.subr.bf16.mxu0 0
    %118 = vmatpush2.bf16.msra.mxu0 0
    %119 = vmatprep.subr.bf16.mxu0 0
    %120 = vmatpush2.bf16.msra.mxu0 0
    %121 = vmatprep.subr.bf16.mxu0 0
    %122 = vmatpush2.bf16.msra.mxu0 0
    %123 = vmatprep.subr.bf16.mxu0 0
    %124 = vmatpush2.bf16.msra.mxu0 0
    %125 = vmatprep.mubr.bf16.mxu0 0
    %126 = vmatmul.mubr.bf16.gmra.mxu0 %v85
    %v127 = vpop.f32.mrf.mxu0
    %v128 = vadd.f32 %v66, %v127
    %v129 = vpop.f32.mrf.mxu0
    %v130 = vpop.f32.mrf.mxu0
    %v131 = vpop.f32.mrf.mxu0
    %132 = vdwg.mxu0
    %v133 = vmax.f32 %v128, 0.0
    %v134 = vpack.c.bf16 %v133, %v133
    %v135 = vld [vmem:[%s3] sm:$0xf]
    %v136 = vld [vmem:[%s3 + $0x4] sm:$0xf]
    %v137 = vld [vmem:[%s3 + $0x8] sm:$0xf]
    %v138 = vld [vmem:[%s3 + $0xc] sm:$0xf]
    %v139 = vld [vmem:[%s3 + $0x10] sm:$0xf]
    %v140 = vld [vmem:[%s3 + $0x14] sm:$0xf]
    %v141 = vld [vmem:[%s3 + $0x18] sm:$0xf]
    %v142 = vld [vmem:[%s3 + $0x1c] sm:$0xf]
    %v143 = vld [vmem:[%s3 + $0x20] sm:$0xf]
    %v144 = vld [vmem:[%s3 + $0x24] sm:$0xf]
    %v145 = vld [vmem:[%s3 + $0x28] sm:$0xf]
    %v146 = vld [vmem:[%s3 + $0x2c] sm:$0xf]
    %v147 = vld [vmem:[%s3 + $0x30] sm:$0xf]
    %v148 = vld [vmem:[%s3 + $0x34] sm:$0xf]
    %v149 = vld [vmem:[%s3 + $0x38] sm:$0xf]
    %v150 = vld [vmem:[%s3 + $0x3c] sm:$0xf]
    %v151 = vld [vmem:[%s4] sm:$0x1]
    %v153 = vlaneseq
    %v154 = vshrl.u32 %v153, 7
    %v155 = vsub.s32 0, %v154
    %v156 = vrot.slane %v151, %v155
    %v174 = vunpack.c.l.b16 %v135
    %v175 = vunpack.c.l.b16 %v136
    %v176 = vunpack.c.l.b16 %v137
    %v177 = vunpack.c.l.b16 %v138
    %v178 = vunpack.c.l.b16 %v139
    %v179 = vunpack.c.l.b16 %v140
    %v180 = vunpack.c.l.b16 %v141
    %v181 = vunpack.c.l.b16 %v142
    %v182 = vunpack.c.l.b16 %v143
    %v183 = vunpack.c.l.b16 %v144
    %v184 = vunpack.c.l.b16 %v145
    %v185 = vunpack.c.l.b16 %v146
    %v186 = vunpack.c.l.b16 %v147
    %v187 = vunpack.c.l.b16 %v148
    %v188 = vunpack.c.l.b16 %v149
    %v189 = vunpack.c.l.b16 %v150
    %v190 = vpack.c.b16 %v175, %v174
    %v191 = vpack.c.b16 %v177, %v176
    %v192 = vpack.c.b16 %v179, %v178
    %v193 = vpack.c.b16 %v181, %v180
    %v194 = vpack.c.b16 %v183, %v182
    %v195 = vpack.c.b16 %v185, %v184
    %v196 = vpack.c.b16 %v187, %v186
    %v197 = vpack.c.b16 %v189, %v188
    %206 = vmatprep.subr.bf16.mxu0 0
    %207 = vmatpush1.bf16.msra.mxu0 %v197
    %208 = vmatprep.subr.bf16.mxu0 0
    %209 = vmatpush1.bf16.msra.mxu0 %v196
    %210 = vmatprep.subr.bf16.mxu0 0
    %211 = vmatpush1.bf16.msra.mxu0 %v195
    %212 = vmatprep.subr.bf16.mxu0 0
    %213 = vmatpush1.bf16.msra.mxu0 %v194
    %214 = vmatprep.subr.bf16.mxu0 0
    %215 = vmatpush1.bf16.msra.mxu0 %v193
    %216 = vmatprep.subr.bf16.mxu0 0
    %217 = vmatpush1.bf16.msra.mxu0 %v192
    %218 = vmatprep.subr.bf16.mxu0 0
    %219 = vmatpush1.bf16.msra.mxu0 %v191
    %220 = vmatprep.subr.bf16.mxu0 0
    %221 = vmatpush1.bf16.msra.mxu0 %v190
    %222 = vmatprep.subr.bf16.mxu0 0
    %223 = vmatpush2.bf16.msra.mxu0 0
    %224 = vmatprep.subr.bf16.mxu0 0
    %225 = vmatpush2.bf16.msra.mxu0 0
    %226 = vmatprep.subr.bf16.mxu0 0
    %227 = vmatpush2.bf16.msra.mxu0 0
    %228 = vmatprep.subr.bf16.mxu0 0
    %229 = vmatpush2.bf16.msra.mxu0 0
    %230 = vmatprep.subr.bf16.mxu0 0
    %231 = vmatpush2.bf16.msra.mxu0 0
    %232 = vmatprep.subr.bf16.mxu0 0
    %233 = vmatpush2.bf16.msra.mxu0 0
    %234 = vmatprep.subr.bf16.mxu0 0
    %235 = vmatpush2.bf16.msra.mxu0 0
    %236 = vmatprep.subr.bf16.mxu0 0
    %237 = vmatpush2.bf16.msra.mxu0 0
    %238 = vmatprep.mubr.bf16.mxu0 0
    %239 = vmatmul.mubr.bf16.gmra.mxu0 %v134
    %v240 = vpop.f32.mrf.mxu0
    %v241 = vadd.f32 %v156, %v240
    %v242 = vpop.f32.mrf.mxu0
    %v243 = vpop.f32.mrf.mxu0
    %v244 = vpop.f32.mrf.mxu0
    %245 = vdwg.mxu0
    %v246 = vmax.f32 %v241, 0.0
    %v247 = vpack.c.bf16 %v246, %v246
    %v248 = vld [vmem:[%s5] sm:$0xf]
    %v249 = vld [vmem:[%s5 + $0x4] sm:$0xf]
    %v250 = vld [vmem:[%s5 + $0x8] sm:$0xf]
    %v251 = vld [vmem:[%s5 + $0xc] sm:$0xf]
    %v252 = vld [vmem:[%s5 + $0x10] sm:$0xf]
    %v253 = vld [vmem:[%s5 + $0x14] sm:$0xf]
    %v254 = vld [vmem:[%s5 + $0x18] sm:$0xf]
    %v255 = vld [vmem:[%s5 + $0x1c] sm:$0xf]
    %v256 = vld [vmem:[%s5 + $0x20] sm:$0xf]
    %v257 = vld [vmem:[%s5 + $0x24] sm:$0xf]
    %v258 = vld [vmem:[%s5 + $0x28] sm:$0xf]
    %v259 = vld [vmem:[%s5 + $0x2c] sm:$0xf]
    %v260 = vld [vmem:[%s5 + $0x30] sm:$0xf]
    %v261 = vld [vmem:[%s5 + $0x34] sm:$0xf]
    %v262 = vld [vmem:[%s5 + $0x38] sm:$0xf]
    %v263 = vld [vmem:[%s5 + $0x3c] sm:$0xf]
    %v264 = vld [vmem:[#allocation5] sm:$0x1]
    %v266 = vlaneseq
    %v267 = vshrl.u32 %v266, 7
    %v268 = vsub.s32 0, %v267
    %v269 = vrot.slane %v264, %v268
    %v287 = vunpack.c.l.b16 %v248
    %v288 = vunpack.c.l.b16 %v249
    %v289 = vunpack.c.l.b16 %v250
    %v290 = vunpack.c.l.b16 %v251
    %v291 = vunpack.c.l.b16 %v252
    %v292 = vunpack.c.l.b16 %v253
    %v293 = vunpack.c.l.b16 %v254
    %v294 = vunpack.c.l.b16 %v255
    %v295 = vunpack.c.l.b16 %v256
    %v296 = vunpack.c.l.b16 %v257
    %v297 = vunpack.c.l.b16 %v258
    %v298 = vunpack.c.l.b16 %v259
    %v299 = vunpack.c.l.b16 %v260
    %v300 = vunpack.c.l.b16 %v261
    %v301 = vunpack.c.l.b16 %v262
    %v302 = vunpack.c.l.b16 %v263
    %v303 = vpack.c.b16 %v288, %v287
    %v304 = vpack.c.b16 %v290, %v289
    %v305 = vpack.c.b16 %v292, %v291
    %v306 = vpack.c.b16 %v294, %v293
    %v307 = vpack.c.b16 %v296, %v295
    %v308 = vpack.c.b16 %v298, %v297
    %v309 = vpack.c.b16 %v300, %v299
    %v310 = vpack.c.b16 %v302, %v301
    %319 = vmatprep.subr.bf16.mxu0 0
    %320 = vmatpush1.bf16.msra.mxu0 %v310
    %321 = vmatprep.subr.bf16.mxu0 0
    %322 = vmatpush1.bf16.msra.mxu0 %v309
    %323 = vmatprep.subr.bf16.mxu0 0
    %324 = vmatpush1.bf16.msra.mxu0 %v308
    %325 = vmatprep.subr.bf16.mxu0 0
    %326 = vmatpush1.bf16.msra.mxu0 %v307
    %327 = vmatprep.subr.bf16.mxu0 0
    %328 = vmatpush1.bf16.msra.mxu0 %v306
    %329 = vmatprep.subr.bf16.mxu0 0
    %330 = vmatpush1.bf16.msra.mxu0 %v305
    %331 = vmatprep.subr.bf16.mxu0 0
    %332 = vmatpush1.bf16.msra.mxu0 %v304
    %333 = vmatprep.subr.bf16.mxu0 0
    %334 = vmatpush1.bf16.msra.mxu0 %v303
    %335 = vmatprep.subr.bf16.mxu0 0
    %336 = vmatpush2.bf16.msra.mxu0 0
    %337 = vmatprep.subr.bf16.mxu0 0
    %338 = vmatpush2.bf16.msra.mxu0 0
    %339 = vmatprep.subr.bf16.mxu0 0
    %340 = vmatpush2.bf16.msra.mxu0 0
    %341 = vmatprep.subr.bf16.mxu0 0
    %342 = vmatpush2.bf16.msra.mxu0 0
    %343 = vmatprep.subr.bf16.mxu0 0
    %344 = vmatpush2.bf16.msra.mxu0 0
    %345 = vmatprep.subr.bf16.mxu0 0
    %346 = vmatpush2.bf16.msra.mxu0 0
    %347 = vmatprep.subr.bf16.mxu0 0
    %348 = vmatpush2.bf16.msra.mxu0 0
    %349 = vmatprep.subr.bf16.mxu0 0
    %350 = vmatpush2.bf16.msra.mxu0 0
    %351 = vmatprep.mubr.bf16.mxu0 0
    %352 = vmatmul.mubr.bf16.gmra.mxu0 %v247
    %v353 = vpop.f32.mrf.mxu0
    %v354 = vadd.f32 %v269, %v353
    %v355 = vpop.f32.mrf.mxu0
    %v356 = vpop.f32.mrf.mxu0
    %v357 = vpop.f32.mrf.mxu0
    %358 = vdwg.mxu0
    %vm359 = vcmask 39936
    %v360 = vsel %vm359, %v354, -inf
    %361 = vmax.xlane.f32.xlu0 %v360
    %v362 = vpop.xlane.xlu0 %361
    %v363 = vsub.f32 %v354, %v362
    %v364 = vmul.f32 %v363, 1.442695
    %v365 = vpow.pop %v364
    %v366 = vsel %vm359, %v365, 0.0
    %367 = vadd.xlane.f32.xlu0 %v366
    %v368 = vpop.xlane.xlu0 %367
    %v369 = vrcp.pop %v368
    %v370 = vmul.f32 %v365, %v369
    %371 = vst.msk [vmem:[#allocation7] sm:$0xff] %vm359, %v370
    // Predicated region
    $region38: #{feature_classifier_forward.1} parent=1 // pred_check
      _
    $region39: #{feature_classifier_forward.1} parent=1 // pred_check_branch
      %373 = sbr.rel (0) target = $region41
    $region40: #{feature_classifier_forward.1} parent=1 // pred_region
      %s375 = ssub.s32 128, 128
      %376 = vsyncadd [#allocation4], %s375
      %s378 = sshll.u32 [#allocation7], 4
      %s379 = int_to_ptr.vmem [resolvable:$true] %s378
      %381 = dma.vmem_to_hbm [thread:$0]  %s379, 128, %s7, [#allocation4]
    $region41: #{feature_classifier_forward.1} parent=1 // pred_fallthru
      _
    // Predicated region
    $region42: #{feature_classifier_forward.1} parent=1 // pred_check
      _
    $region43: #{feature_classifier_forward.1} parent=1 // pred_check_branch
      %383 = sbr.rel (0) target = $region45
    $region44: #{feature_classifier_forward.1} parent=1 // pred_region
      %384 = dma.done [#allocation4], 128
    $region45: #{feature_classifier_forward.1} parent=1 // pred_fallthru
      _
    %385 = vsyncpa [#allocation3], 1
    %386 = vsyncpa [#allocation6], 1
    %387 = vsyncpa [#allocation4], 1

</llo_original>
